<compile_context>
chip_gen: v7x
topology: tpu7x:2x2x1
jax: 0.10.0
libtpu: 0.0.40
codegen_flags: <defaults>
</compile_context>

<pallas_src>
import math

import jax
import jax.numpy as jnp
from jax import lax
from jax.experimental import pallas as pl
from jax.experimental.pallas import tpu as pltpu

# ----------------------------- configuration (small, module-consistent) ------
B = 2           # batch
C = 6           # input_channel (6-axis IMU)
PATCH_NUM = 8   # L : number of patches / tokens
PATCH_LEN = 16  # W : patch length
D = 32          # mlp_in_dim
EXP = 4         # expansion
LAYERS = 4      # layer_num
WC = PATCH_LEN * C          # per-token feature width (96)
T = PATCH_NUM * PATCH_LEN   # measurement length (128)
HD = EXP * D                # hidden width (128)

BF16 = jnp.bfloat16


def _gelu_exact(x):
    # nn.GELU() default = exact (erf-based) GELU; kept for PyTorch parity.
    return 0.5 * x * (1.0 + lax.erf(x * (1.0 / math.sqrt(2.0))))


# ----------------------------- Pallas kernel ---------------------------------
def resmlp_kernel(x_ref, w_in_ref, wtok_ref, w12_ref, b1_ref, cbias_ref, aff_ref, o_ref):
    # x_ref    : [M, WC]           bf16  stacked tokens (M = B*L), features in '(c w)' order
    # w_in_ref : [WC, D]           bf16  row-permuted patch-embedding weight
    # wtok_ref : [LAYERS, M, M]    bf16  block-diagonal token-mix weights (Conv1d 1x1, no bias)
    # w12_ref  : [LAYERS, 2, D, HD] bf16 slab: [:,0]=w1 (g2 folded), [:,1]=(w2*s2)^T (lane-dense)
    # b1_ref   : [LAYERS, HD]      f32   folded channel-mix bias (bb2 @ w1), lane-dense
    # cbias_ref: [LAYERS, M, D]    f32   folded token-mix bias outer(rowsum(wtok_bd), bb1*s1)
    # aff_ref  : [LAYERS+3, D]     f32   rows: [g1*s1 (LAYERS) | gf | bf | b_in]
    def row(r):  # static [1, D] slice of the packed affine table
        return aff_ref[r:r + 1, :]

    # patch embedding: Linear(W*C -> D) with bias (bf16 MXU operands, f32 accumulate)
    h = jnp.dot(x_ref[...], w_in_ref[...],
                preferred_element_type=jnp.float32) + row(LAYERS + 2)

    for i in range(LAYERS):  # static unroll over ResMLP blocks
        # ---- token mixing: MXU push on h directly; affine/scale applied after the matmul
        t = jnp.dot(wtok_ref[i], h.astype(BF16), preferred_element_type=jnp.float32)
        h = h + t * row(i) + cbias_ref[i]

        # ---- channel mixing: GELU MLP, affine/scale folded into w1/w2, Dropout = identity
        u = jnp.dot(h.astype(BF16), w12_ref[i, 0],
                    preferred_element_type=jnp.float32) + b1_ref[i:i + 1, :]
        u = _gelu_exact(u)
        h = h + lax.dot_general(u.astype(BF16), w12_ref[i, 1],
                                dimension_numbers=(((1,), (1,)), ((), ())),
                                preferred_element_type=jnp.float32)

    # ---- final Affine
    o_ref[...] = (h * row(LAYERS) + row(LAYERS + 1)).astype(o_ref.dtype)


# ----------------------------- host-side weight folding (runs ONCE) -----------
def fold_params(p, batch):
    """Fold affine/layer-scale constants into the weights; done once at construction."""
    # embedding weight: permute rows from '(w c)' order to '(c w)' order
    w_in_perm = p["w_in"].reshape(PATCH_LEN, C, D).transpose(1, 0, 2).reshape(WC, D)

    # block-diagonal token-mix weights: one [B*L, B*L] matmul covers all batches.
    # NOTE: O(B^2) zeros -- correct and cheapest at B<=4; switch to per-batch einsum / [L, B*D]
    # view for large deployment batches.
    eye_b = jnp.eye(batch, dtype=jnp.float32)
    wtok_bd = jnp.einsum("ab,lij->laibj", eye_b, p["wtok"]).reshape(
        LAYERS, batch * PATCH_NUM, batch * PATCH_NUM)

    # token-mix fold:  h += (wtok @ h) * (g1*s1) + outer(rowsum(wtok_bd), bb1*s1)
    g1s1 = (p["g1"] * p["s1"]).reshape(LAYERS, D)
    b1s1 = (p["bb1"] * p["s1"]).reshape(LAYERS, D)
    cbias = jnp.sum(wtok_bd, axis=2)[:, :, None] * b1s1[:, None, :]   # [LAYERS, M, D]

    # channel-mix folds: (h*g2 + bb2) @ w1 == h @ (g2-rowscaled w1) + bb2 @ w1 ; (u@w2)*s2 == u@(w2*s2)
    w1f = p["w1"] * jnp.swapaxes(p["g2"], 1, 2)          # [LAYERS, D, HD]
    b1s = jnp.einsum("lod,ldh->lh", p["bb2"], p["w1"])   # [LAYERS, HD]
    w2fT = jnp.swapaxes(p["w2"] * p["s2"], 1, 2)         # [LAYERS, D, HD] lane-dense
    w12 = jnp.stack([w1f, w2fT], axis=1)                 # [LAYERS, 2, D, HD] -> one DMA

    # packed affine table: rows [g1*s1 (LAYERS) | gf | bf | b_in]
    aff = jnp.concatenate([
        g1s1,
        p["gf"].reshape(1, D),
        p["bf"].reshape(1, D),
        p["b_in"].reshape(1, D),
    ], axis=0)                                           # [LAYERS+3, D]

    return (w_in_perm.astype(BF16), wtok_bd.astype(BF16), w12.astype(BF16),
            b1s.astype(jnp.float32), cbias.astype(jnp.float32), aff.astype(jnp.float32))


# ----------------------------- wrapper ----------------------------------------
def make_resmlp_extractor(params, batch):
    """Fold params once; return a jit'd apply(x): [B, C, T] f32 -> [B, PATCH_NUM, D] f32."""
    folded = fold_params(params, batch)   # hoisted out of the per-call path
    Mrows = batch * PATCH_NUM

    def full_spec(shape):
        zeros = (0,) * len(shape)
        return pl.BlockSpec(shape, lambda i, zeros=zeros: zeros)

    in_shapes = [(Mrows, WC)] + [a.shape for a in folded]
    call = pl.pallas_call(
        resmlp_kernel,
        out_shape=jax.ShapeDtypeStruct((Mrows, D), jnp.float32),
        grid_spec=pltpu.PrefetchScalarGridSpec(
            num_scalar_prefetch=0,
            grid=(1,),                                   # single step: whole problem <1 MiB in VMEM
            in_specs=[full_spec(s) for s in in_shapes],
            out_specs=full_spec((Mrows, D)),
        ),
        compiler_params=pltpu.CompilerParams(
            dimension_semantics=("arbitrary",)),         # don't split a ~1 MFLOP kernel across TCs
    )

    @jax.jit
    def apply(x):
        # cheap rearrange 'b c (l w) -> b l (c w)' (minor dim w stays contiguous), compiled into
        # the same XLA program as the pallas_call -> one dispatch per call.
        x2d = jnp.transpose(x.reshape(batch, C, PATCH_NUM, PATCH_LEN),
                            (0, 2, 1, 3)).reshape(Mrows, WC).astype(BF16)
        out2d = call(x2d, *folded)
        return out2d.reshape(batch, PATCH_NUM, D)

    return apply


# ----------------------------- pure-JAX reference (unfused, original layout, f32) ---
def resmlp_reference(x, p):
    Bn = x.shape[0]
    x_r = x.reshape(Bn, C, PATCH_NUM, PATCH_LEN).transpose(0, 2, 3, 1).reshape(Bn, PATCH_NUM, WC)
    h = x_r @ p["w_in"] + p["b_in"]
    for i in range(LAYERS):
        a = h * p["g1"][i] + p["bb1"][i]
        t = jnp.einsum("ij,bjd->bid", p["wtok"][i], a)
        h = t * p["s1"][i] + h
        a = h * p["g2"][i] + p["bb2"][i]
        u = _gelu_exact(a @ p["w1"][i]) @ p["w2"][i]
        h = u * p["s2"][i] + h
    return h * p["gf"] + p["bf"]


# ----------------------------- deterministic parameter init --------------------
def init_params(key):
    # Module default init is g=1, b=0, scale=0.1; randomize around those values so the
    # folded-constant path is actually exercised by the correctness check.
    ks = jax.random.split(key, 12)
    n = lambda k, shape, s: jax.random.normal(k, shape, jnp.float32) * s
    return dict(
        w_in=n(ks[0], (WC, D), 0.05),
        b_in=n(ks[1], (1, D), 0.02),
        g1=1.0 + n(ks[2], (LAYERS, 1, D), 0.1),
        bb1=n(ks[3], (LAYERS, 1, D), 0.02),
        wtok=n(ks[4], (LAYERS, PATCH_NUM, PATCH_NUM), 0.1),
        s1=0.1 + n(ks[5], (LAYERS, 1, D), 0.01),
        g2=1.0 + n(ks[6], (LAYERS, 1, D), 0.1),
        bb2=n(ks[7], (LAYERS, 1, D), 0.02),
        w1=n(ks[8], (LAYERS, D, HD), 0.05),
        w2=n(ks[9], (LAYERS, HD, D), 0.05),
        s2=0.1 + n(ks[10], (LAYERS, 1, D), 0.01),
        gf=1.0 + n(ks[11], (1, D), 0.1),
        bf=jnp.zeros((1, D), jnp.float32),
    )


if __name__ == "__main__":
    key = jax.random.PRNGKey(0)
    kx, kp = jax.random.split(key)
    x = jax.random.normal(kx, (B, C, T), jnp.float32)   # [2, 6, 128]
    params = init_params(kp)

    extractor = make_resmlp_extractor(params, B)        # fold + compile once
    out = extractor(x)
    out = jax.block_until_ready(out)
    assert out.shape == (B, PATCH_NUM, D)

    ref = resmlp_reference(x, params)
    # bf16 MXU operands (f32 accumulation) vs. full-f32 reference -> relaxed tolerance.
    assert jnp.allclose(out, ref, atol=5e-2, rtol=5e-2), "mismatch vs pure-JAX reference"

    print("KERNEL_OK")
</pallas_src>

<mosaic_0001>
module attributes {stable_mosaic.version = 11 : i64} {
  func.func @resmlp_kernel(%arg0: i32, %arg1: memref<16x96xbf16, #tpu.memory_space<vmem>>, %arg2: memref<96x32xbf16, #tpu.memory_space<vmem>>, %arg3: memref<4x16x16xbf16, #tpu.memory_space<vmem>>, %arg4: memref<4x2x32x128xbf16, #tpu.memory_space<vmem>>, %arg5: memref<4x128xf32, #tpu.memory_space<vmem>>, %arg6: memref<4x16x32xf32, #tpu.memory_space<vmem>>, %arg7: memref<7x32xf32, #tpu.memory_space<vmem>>, %arg8: memref<16x32xf32, #tpu.memory_space<vmem>>) attributes {dimension_semantics = [#tpu.dimension_semantics<arbitrary>], iteration_bounds = array<i64: 1>, scalar_prefetch = 0 : i64, scratch_operands = 0 : i64, tpu.core_type = #tpu.core_type<tc>, window_params = [{pipeline_mode = #tpu.pipeline_mode<synchronous>, transform_indices = @transform_0, window_bounds = array<i64: 16, 96>}, {pipeline_mode = #tpu.pipeline_mode<synchronous>, transform_indices = @transform_1, window_bounds = array<i64: 96, 32>}, {pipeline_mode = #tpu.pipeline_mode<synchronous>, transform_indices = @transform_2, window_bounds = array<i64: 4, 16, 16>}, {pipeline_mode = #tpu.pipeline_mode<synchronous>, transform_indices = @transform_3, window_bounds = array<i64: 4, 2, 32, 128>}, {pipeline_mode = #tpu.pipeline_mode<synchronous>, transform_indices = @transform_4, window_bounds = array<i64: 4, 128>}, {pipeline_mode = #tpu.pipeline_mode<synchronous>, transform_indices = @transform_5, window_bounds = array<i64: 4, 16, 32>}, {pipeline_mode = #tpu.pipeline_mode<synchronous>, transform_indices = @transform_6, window_bounds = array<i64: 7, 32>}, {pipeline_mode = #tpu.pipeline_mode<synchronous>, transform_indices = @transform_7, window_bounds = array<i64: 16, 32>}]} {
    %c0 = arith.constant 0 : index
    %c0_0 = arith.constant 0 : index
    %0 = vector.load %arg1[%c0, %c0_0] : memref<16x96xbf16, #tpu.memory_space<vmem>>, vector<16x96xbf16>
    %c0_1 = arith.constant 0 : index
    %c0_2 = arith.constant 0 : index
    %1 = vector.load %arg2[%c0_1, %c0_2] : memref<96x32xbf16, #tpu.memory_space<vmem>>, vector<96x32xbf16>
    %cst = arith.constant dense<0.000000e+00> : vector<16x32xf32>
    %2 = tpu.matmul %0, %1, %cst {dimension_numbers = #tpu.dot_dimension_numbers<[1], [0], [0], [1], [0, 0, 1, 1], [], []>} : vector<16x96xbf16>, vector<96x32xbf16>, vector<16x32xf32> -> vector<16x32xf32>
    %c6 = arith.constant 6 : index
    %c0_3 = arith.constant 0 : index
    %3 = vector.load %arg7[%c6, %c0_3] : memref<7x32xf32, #tpu.memory_space<vmem>>, vector<1x32xf32>
    %4 = vector.broadcast %3 : vector<1x32xf32> to vector<16x32xf32>
    %5 = arith.addf %2, %4 : vector<16x32xf32>
    %c0_4 = arith.constant 0 : index
    %c0_5 = arith.constant 0 : index
    %c0_6 = arith.constant 0 : index
    %6 = vector.load %arg3[%c0_4, %c0_5, %c0_6] : memref<4x16x16xbf16, #tpu.memory_space<vmem>>, vector<1x16x16xbf16>
    %7 = vector.shape_cast %6 : vector<1x16x16xbf16> to vector<16x16xbf16>
    %8 = arith.truncf %5 : vector<16x32xf32> to vector<16x32xbf16>
    %cst_7 = arith.constant dense<0.000000e+00> : vector<16x32xf32>
    %9 = tpu.matmul %7, %8, %cst_7 {dimension_numbers = #tpu.dot_dimension_numbers<[1], [0], [0], [1], [0, 0, 1, 1], [], []>} : vector<16x16xbf16>, vector<16x32xbf16>, vector<16x32xf32> -> vector<16x32xf32>
    %c0_8 = arith.constant 0 : index
    %c0_9 = arith.constant 0 : index
    %10 = vector.load %arg7[%c0_8, %c0_9] : memref<7x32xf32, #tpu.memory_space<vmem>>, vector<1x32xf32>
    %11 = vector.broadcast %10 : vector<1x32xf32> to vector<16x32xf32>
    %12 = arith.mulf %9, %11 : vector<16x32xf32>
    %13 = arith.addf %5, %12 : vector<16x32xf32>
    %c0_10 = arith.constant 0 : index
    %c0_11 = arith.constant 0 : index
    %c0_12 = arith.constant 0 : index
    %14 = vector.load %arg6[%c0_10, %c0_11, %c0_12] : memref<4x16x32xf32, #tpu.memory_space<vmem>>, vector<1x16x32xf32>
    %15 = vector.shape_cast %14 : vector<1x16x32xf32> to vector<16x32xf32>
    %16 = arith.addf %13, %15 : vector<16x32xf32>
    %17 = arith.truncf %16 : vector<16x32xf32> to vector<16x32xbf16>
    %c0_13 = arith.constant 0 : index
    %c0_14 = arith.constant 0 : index
    %c0_15 = arith.constant 0 : index
    %c0_16 = arith.constant 0 : index
    %18 = vector.load %arg4[%c0_13, %c0_14, %c0_15, %c0_16] : memref<4x2x32x128xbf16, #tpu.memory_space<vmem>>, vector<1x1x32x128xbf16>
    %19 = vector.shape_cast %18 : vector<1x1x32x128xbf16> to vector<32x128xbf16>
    %cst_17 = arith.constant dense<0.000000e+00> : vector<16x128xf32>
    %20 = tpu.matmul %17, %19, %cst_17 {dimension_numbers = #tpu.dot_dimension_numbers<[1], [0], [0], [1], [0, 0, 1, 1], [], []>} : vector<16x32xbf16>, vector<32x128xbf16>, vector<16x128xf32> -> vector<16x128xf32>
    %c0_18 = arith.constant 0 : index
    %c0_19 = arith.constant 0 : index
    %21 = vector.load %arg5[%c0_18, %c0_19] : memref<4x128xf32, #tpu.memory_space<vmem>>, vector<1x128xf32>
    %22 = vector.broadcast %21 : vector<1x128xf32> to vector<16x128xf32>
    %23 = arith.addf %20, %22 : vector<16x128xf32>
    %cst_20 = arith.constant 5.000000e-01 : f32
    %24 = vector.broadcast %cst_20 : f32 to vector<16x128xf32>
    %25 = arith.mulf %24, %23 : vector<16x128xf32>
    %cst_21 = arith.constant 0.707106769 : f32
    %26 = vector.broadcast %cst_21 : f32 to vector<16x128xf32>
    %27 = arith.mulf %23, %26 : vector<16x128xf32>
    %28 = math.erf %27 : vector<16x128xf32>
    %cst_22 = arith.constant 1.000000e+00 : f32
    %29 = vector.broadcast %cst_22 : f32 to vector<16x128xf32>
    %30 = arith.addf %29, %28 : vector<16x128xf32>
    %31 = arith.mulf %25, %30 : vector<16x128xf32>
    %32 = arith.truncf %31 : vector<16x128xf32> to vector<16x128xbf16>
    %c0_23 = arith.constant 0 : index
    %c1 = arith.constant 1 : index
    %c0_24 = arith.constant 0 : index
    %c0_25 = arith.constant 0 : index
    %33 = vector.load %arg4[%c0_23, %c1, %c0_24, %c0_25] : memref<4x2x32x128xbf16, #tpu.memory_space<vmem>>, vector<1x1x32x128xbf16>
    %34 = vector.shape_cast %33 : vector<1x1x32x128xbf16> to vector<32x128xbf16>
    %cst_26 = arith.constant dense<0.000000e+00> : vector<16x32xf32>
    %35 = tpu.matmul %32, %34, %cst_26 {dimension_numbers = #tpu.dot_dimension_numbers<[1], [1], [0], [0], [0, 0, 1, 0], [], []>} : vector<16x128xbf16>, vector<32x128xbf16>, vector<16x32xf32> -> vector<16x32xf32>
    %36 = arith.addf %16, %35 : vector<16x32xf32>
    %c1_27 = arith.constant 1 : index
    %c0_28 = arith.constant 0 : index
    %c0_29 = arith.constant 0 : index
    %37 = vector.load %arg3[%c1_27, %c0_28, %c0_29] : memref<4x16x16xbf16, #tpu.memory_space<vmem>>, vector<1x16x16xbf16>
    %38 = vector.shape_cast %37 : vector<1x16x16xbf16> to vector<16x16xbf16>
    %39 = arith.truncf %36 : vector<16x32xf32> to vector<16x32xbf16>
    %cst_30 = arith.constant dense<0.000000e+00> : vector<16x32xf32>
    %40 = tpu.matmul %38, %39, %cst_30 {dimension_numbers = #tpu.dot_dimension_numbers<[1], [0], [0], [1], [0, 0, 1, 1], [], []>} : vector<16x16xbf16>, vector<16x32xbf16>, vector<16x32xf32> -> vector<16x32xf32>
    %c1_31 = arith.constant 1 : index
    %c0_32 = arith.constant 0 : index
    %41 = vector.load %arg7[%c1_31, %c0_32] : memref<7x32xf32, #tpu.memory_space<vmem>>, vector<1x32xf32>
    %42 = vector.broadcast %41 : vector<1x32xf32> to vector<16x32xf32>
    %43 = arith.mulf %40, %42 : vector<16x32xf32>
    %44 = arith.addf %36, %43 : vector<16x32xf32>
    %c1_33 = arith.constant 1 : index
    %c0_34 = arith.constant 0 : index
    %c0_35 = arith.constant 0 : index
    %45 = vector.load %arg6[%c1_33, %c0_34, %c0_35] : memref<4x16x32xf32, #tpu.memory_space<vmem>>, vector<1x16x32xf32>
    %46 = vector.shape_cast %45 : vector<1x16x32xf32> to vector<16x32xf32>
    %47 = arith.addf %44, %46 : vector<16x32xf32>
    %48 = arith.truncf %47 : vector<16x32xf32> to vector<16x32xbf16>
    %c1_36 = arith.constant 1 : index
    %c0_37 = arith.constant 0 : index
    %c0_38 = arith.constant 0 : index
    %c0_39 = arith.constant 0 : index
    %49 = vector.load %arg4[%c1_36, %c0_37, %c0_38, %c0_39] : memref<4x2x32x128xbf16, #tpu.memory_space<vmem>>, vector<1x1x32x128xbf16>
    %50 = vector.shape_cast %49 : vector<1x1x32x128xbf16> to vector<32x128xbf16>
    %cst_40 = arith.constant dense<0.000000e+00> : vector<16x128xf32>
    %51 = tpu.matmul %48, %50, %cst_40 {dimension_numbers = #tpu.dot_dimension_numbers<[1], [0], [0], [1], [0, 0, 1, 1], [], []>} : vector<16x32xbf16>, vector<32x128xbf16>, vector<16x128xf32> -> vector<16x128xf32>
    %c1_41 = arith.constant 1 : index
    %c0_42 = arith.constant 0 : index
    %52 = vector.load %arg5[%c1_41, %c0_42] : memref<4x128xf32, #tpu.memory_space<vmem>>, vector<1x128xf32>
    %53 = vector.broadcast %52 : vector<1x128xf32> to vector<16x128xf32>
    %54 = arith.addf %51, %53 : vector<16x128xf32>
    %cst_43 = arith.constant 5.000000e-01 : f32
    %55 = vector.broadcast %cst_43 : f32 to vector<16x128xf32>
    %56 = arith.mulf %55, %54 : vector<16x128xf32>
    %cst_44 = arith.constant 0.707106769 : f32
    %57 = vector.broadcast %cst_44 : f32 to vector<16x128xf32>
    %58 = arith.mulf %54, %57 : vector<16x128xf32>
    %59 = math.erf %58 : vector<16x128xf32>
    %cst_45 = arith.constant 1.000000e+00 : f32
    %60 = vector.broadcast %cst_45 : f32 to vector<16x128xf32>
    %61 = arith.addf %60, %59 : vector<16x128xf32>
    %62 = arith.mulf %56, %61 : vector<16x128xf32>
    %63 = arith.truncf %62 : vector<16x128xf32> to vector<16x128xbf16>
    %c1_46 = arith.constant 1 : index
    %c1_47 = arith.constant 1 : index
    %c0_48 = arith.constant 0 : index
    %c0_49 = arith.constant 0 : index
    %64 = vector.load %arg4[%c1_46, %c1_47, %c0_48, %c0_49] : memref<4x2x32x128xbf16, #tpu.memory_space<vmem>>, vector<1x1x32x128xbf16>
    %65 = vector.shape_cast %64 : vector<1x1x32x128xbf16> to vector<32x128xbf16>
    %cst_50 = arith.constant dense<0.000000e+00> : vector<16x32xf32>
    %66 = tpu.matmul %63, %65, %cst_50 {dimension_numbers = #tpu.dot_dimension_numbers<[1], [1], [0], [0], [0, 0, 1, 0], [], []>} : vector<16x128xbf16>, vector<32x128xbf16>, vector<16x32xf32> -> vector<16x32xf32>
    %67 = arith.addf %47, %66 : vector<16x32xf32>
    %c2 = arith.constant 2 : index
    %c0_51 = arith.constant 0 : index
    %c0_52 = arith.constant 0 : index
    %68 = vector.load %arg3[%c2, %c0_51, %c0_52] : memref<4x16x16xbf16, #tpu.memory_space<vmem>>, vector<1x16x16xbf16>
    %69 = vector.shape_cast %68 : vector<1x16x16xbf16> to vector<16x16xbf16>
    %70 = arith.truncf %67 : vector<16x32xf32> to vector<16x32xbf16>
    %cst_53 = arith.constant dense<0.000000e+00> : vector<16x32xf32>
    %71 = tpu.matmul %69, %70, %cst_53 {dimension_numbers = #tpu.dot_dimension_numbers<[1], [0], [0], [1], [0, 0, 1, 1], [], []>} : vector<16x16xbf16>, vector<16x32xbf16>, vector<16x32xf32> -> vector<16x32xf32>
    %c2_54 = arith.constant 2 : index
    %c0_55 = arith.constant 0 : index
    %72 = vector.load %arg7[%c2_54, %c0_55] : memref<7x32xf32, #tpu.memory_space<vmem>>, vector<1x32xf32>
    %73 = vector.broadcast %72 : vector<1x32xf32> to vector<16x32xf32>
    %74 = arith.mulf %71, %73 : vector<16x32xf32>
    %75 = arith.addf %67, %74 : vector<16x32xf32>
    %c2_56 = arith.constant 2 : index
    %c0_57 = arith.constant 0 : index
    %c0_58 = arith.constant 0 : index
    %76 = vector.load %arg6[%c2_56, %c0_57, %c0_58] : memref<4x16x32xf32, #tpu.memory_space<vmem>>, vector<1x16x32xf32>
    %77 = vector.shape_cast %76 : vector<1x16x32xf32> to vector<16x32xf32>
    %78 = arith.addf %75, %77 : vector<16x32xf32>
    %79 = arith.truncf %78 : vector<16x32xf32> to vector<16x32xbf16>
    %c2_59 = arith.constant 2 : index
    %c0_60 = arith.constant 0 : index
    %c0_61 = arith.constant 0 : index
    %c0_62 = arith.constant 0 : index
    %80 = vector.load %arg4[%c2_59, %c0_60, %c0_61, %c0_62] : memref<4x2x32x128xbf16, #tpu.memory_space<vmem>>, vector<1x1x32x128xbf16>
    %81 = vector.shape_cast %80 : vector<1x1x32x128xbf16> to vector<32x128xbf16>
    %cst_63 = arith.constant dense<0.000000e+00> : vector<16x128xf32>
    %82 = tpu.matmul %79, %81, %cst_63 {dimension_numbers = #tpu.dot_dimension_numbers<[1], [0], [0], [1], [0, 0, 1, 1], [], []>} : vector<16x32xbf16>, vector<32x128xbf16>, vector<16x128xf32> -> vector<16x128xf32>
    %c2_64 = arith.constant 2 : index
    %c0_65 = arith.constant 0 : index
    %83 = vector.load %arg5[%c2_64, %c0_65] : memref<4x128xf32, #tpu.memory_space<vmem>>, vector<1x128xf32>
    %84 = vector.broadcast %83 : vector<1x128xf32> to vector<16x128xf32>
    %85 = arith.addf %82, %84 : vector<16x128xf32>
    %cst_66 = arith.constant 5.000000e-01 : f32
    %86 = vector.broadcast %cst_66 : f32 to vector<16x128xf32>
    %87 = arith.mulf %86, %85 : vector<16x128xf32>
    %cst_67 = arith.constant 0.707106769 : f32
    %88 = vector.broadcast %cst_67 : f32 to vector<16x128xf32>
    %89 = arith.mulf %85, %88 : vector<16x128xf32>
    %90 = math.erf %89 : vector<16x128xf32>
    %cst_68 = arith.constant 1.000000e+00 : f32
    %91 = vector.broadcast %cst_68 : f32 to vector<16x128xf32>
    %92 = arith.addf %91, %90 : vector<16x128xf32>
    %93 = arith.mulf %87, %92 : vector<16x128xf32>
    %94 = arith.truncf %93 : vector<16x128xf32> to vector<16x128xbf16>
    %c2_69 = arith.constant 2 : index
    %c1_70 = arith.constant 1 : index
    %c0_71 = arith.constant 0 : index
    %c0_72 = arith.constant 0 : index
    %95 = vector.load %arg4[%c2_69, %c1_70, %c0_71, %c0_72] : memref<4x2x32x128xbf16, #tpu.memory_space<vmem>>, vector<1x1x32x128xbf16>
    %96 = vector.shape_cast %95 : vector<1x1x32x128xbf16> to vector<32x128xbf16>
    %cst_73 = arith.constant dense<0.000000e+00> : vector<16x32xf32>
    %97 = tpu.matmul %94, %96, %cst_73 {dimension_numbers = #tpu.dot_dimension_numbers<[1], [1], [0], [0], [0, 0, 1, 0], [], []>} : vector<16x128xbf16>, vector<32x128xbf16>, vector<16x32xf32> -> vector<16x32xf32>
    %98 = arith.addf %78, %97 : vector<16x32xf32>
    %c3 = arith.constant 3 : index
    %c0_74 = arith.constant 0 : index
    %c0_75 = arith.constant 0 : index
    %99 = vector.load %arg3[%c3, %c0_74, %c0_75] : memref<4x16x16xbf16, #tpu.memory_space<vmem>>, vector<1x16x16xbf16>
    %100 = vector.shape_cast %99 : vector<1x16x16xbf16> to vector<16x16xbf16>
    %101 = arith.truncf %98 : vector<16x32xf32> to vector<16x32xbf16>
    %cst_76 = arith.constant dense<0.000000e+00> : vector<16x32xf32>
    %102 = tpu.matmul %100, %101, %cst_76 {dimension_numbers = #tpu.dot_dimension_numbers<[1], [0], [0], [1], [0, 0, 1, 1], [], []>} : vector<16x16xbf16>, vector<16x32xbf16>, vector<16x32xf32> -> vector<16x32xf32>
    %c3_77 = arith.constant 3 : index
    %c0_78 = arith.constant 0 : index
    %103 = vector.load %arg7[%c3_77, %c0_78] : memref<7x32xf32, #tpu.memory_space<vmem>>, vector<1x32xf32>
    %104 = vector.broadcast %103 : vector<1x32xf32> to vector<16x32xf32>
    %105 = arith.mulf %102, %104 : vector<16x32xf32>
    %106 = arith.addf %98, %105 : vector<16x32xf32>
    %c3_79 = arith.constant 3 : index
    %c0_80 = arith.constant 0 : index
    %c0_81 = arith.constant 0 : index
    %107 = vector.load %arg6[%c3_79, %c0_80, %c0_81] : memref<4x16x32xf32, #tpu.memory_space<vmem>>, vector<1x16x32xf32>
    %108 = vector.shape_cast %107 : vector<1x16x32xf32> to vector<16x32xf32>
    %109 = arith.addf %106, %108 : vector<16x32xf32>
    %110 = arith.truncf %109 : vector<16x32xf32> to vector<16x32xbf16>
    %c3_82 = arith.constant 3 : index
    %c0_83 = arith.constant 0 : index
    %c0_84 = arith.constant 0 : index
    %c0_85 = arith.constant 0 : index
    %111 = vector.load %arg4[%c3_82, %c0_83, %c0_84, %c0_85] : memref<4x2x32x128xbf16, #tpu.memory_space<vmem>>, vector<1x1x32x128xbf16>
    %112 = vector.shape_cast %111 : vector<1x1x32x128xbf16> to vector<32x128xbf16>
    %cst_86 = arith.constant dense<0.000000e+00> : vector<16x128xf32>
    %113 = tpu.matmul %110, %112, %cst_86 {dimension_numbers = #tpu.dot_dimension_numbers<[1], [0], [0], [1], [0, 0, 1, 1], [], []>} : vector<16x32xbf16>, vector<32x128xbf16>, vector<16x128xf32> -> vector<16x128xf32>
    %c3_87 = arith.constant 3 : index
    %c0_88 = arith.constant 0 : index
    %114 = vector.load %arg5[%c3_87, %c0_88] : memref<4x128xf32, #tpu.memory_space<vmem>>, vector<1x128xf32>
    %115 = vector.broadcast %114 : vector<1x128xf32> to vector<16x128xf32>
    %116 = arith.addf %113, %115 : vector<16x128xf32>
    %cst_89 = arith.constant 5.000000e-01 : f32
    %117 = vector.broadcast %cst_89 : f32 to vector<16x128xf32>
    %118 = arith.mulf %117, %116 : vector<16x128xf32>
    %cst_90 = arith.constant 0.707106769 : f32
    %119 = vector.broadcast %cst_90 : f32 to vector<16x128xf32>
    %120 = arith.mulf %116, %119 : vector<16x128xf32>
    %121 = math.erf %120 : vector<16x128xf32>
    %cst_91 = arith.constant 1.000000e+00 : f32
    %122 = vector.broadcast %cst_91 : f32 to vector<16x128xf32>
    %123 = arith.addf %122, %121 : vector<16x128xf32>
    %124 = arith.mulf %118, %123 : vector<16x128xf32>
    %125 = arith.truncf %124 : vector<16x128xf32> to vector<16x128xbf16>
    %c3_92 = arith.constant 3 : index
    %c1_93 = arith.constant 1 : index
    %c0_94 = arith.constant 0 : index
    %c0_95 = arith.constant 0 : index
    %126 = vector.load %arg4[%c3_92, %c1_93, %c0_94, %c0_95] : memref<4x2x32x128xbf16, #tpu.memory_space<vmem>>, vector<1x1x32x128xbf16>
    %127 = vector.shape_cast %126 : vector<1x1x32x128xbf16> to vector<32x128xbf16>
    %cst_96 = arith.constant dense<0.000000e+00> : vector<16x32xf32>
    %128 = tpu.matmul %125, %127, %cst_96 {dimension_numbers = #tpu.dot_dimension_numbers<[1], [1], [0], [0], [0, 0, 1, 0], [], []>} : vector<16x128xbf16>, vector<32x128xbf16>, vector<16x32xf32> -> vector<16x32xf32>
    %129 = arith.addf %109, %128 : vector<16x32xf32>
    %c4 = arith.constant 4 : index
    %c0_97 = arith.constant 0 : index
    %130 = vector.load %arg7[%c4, %c0_97] : memref<7x32xf32, #tpu.memory_space<vmem>>, vector<1x32xf32>
    %131 = vector.broadcast %130 : vector<1x32xf32> to vector<16x32xf32>
    %132 = arith.mulf %129, %131 : vector<16x32xf32>
    %c5 = arith.constant 5 : index
    %c0_98 = arith.constant 0 : index
    %133 = vector.load %arg7[%c5, %c0_98] : memref<7x32xf32, #tpu.memory_space<vmem>>, vector<1x32xf32>
    %134 = vector.broadcast %133 : vector<1x32xf32> to vector<16x32xf32>
    %135 = arith.addf %132, %134 : vector<16x32xf32>
    %c0_99 = arith.constant 0 : index
    %c0_100 = arith.constant 0 : index
    %136 = vector.load %arg8[%c0_99, %c0_100] : memref<16x32xf32, #tpu.memory_space<vmem>>, vector<16x32xf32>
    tpu.vector_store %arg8[%c0_99, %c0_100], %135 {strides = array<i32>} : memref<16x32xf32, #tpu.memory_space<vmem>>, vector<16x32xf32>,
    return
  }
  func.func @transform_0(%arg0: i32) -> (i32, i32) {
    %c0_i32 = arith.constant 0 : i32
    %c0_i32_0 = arith.constant 0 : i32
    %c0_i32_1 = arith.constant 0 : i32
    return %c0_i32, %c0_i32_0 : i32, i32
  }
  func.func @transform_1(%arg0: i32) -> (i32, i32) {
    %c0_i32 = arith.constant 0 : i32
    %c0_i32_0 = arith.constant 0 : i32
    %c0_i32_1 = arith.constant 0 : i32
    return %c0_i32, %c0_i32_0 : i32, i32
  }
  func.func @transform_2(%arg0: i32) -> (i32, i32, i32) {
    %c0_i32 = arith.constant 0 : i32
    %c0_i32_0 = arith.constant 0 : i32
    %c0_i32_1 = arith.constant 0 : i32
    %c0_i32_2 = arith.constant 0 : i32
    return %c0_i32, %c0_i32_0, %c0_i32_1 : i32, i32, i32
  }
  func.func @transform_3(%arg0: i32) -> (i32, i32, i32, i32) {
    %c0_i32 = arith.constant 0 : i32
    %c0_i32_0 = arith.constant 0 : i32
    %c0_i32_1 = arith.constant 0 : i32
    %c0_i32_2 = arith.constant 0 : i32
    %c0_i32_3 = arith.constant 0 : i32
    return %c0_i32, %c0_i32_0, %c0_i32_1, %c0_i32_2 : i32, i32, i32, i32
  }
  func.func @transform_4(%arg0: i32) -> (i32, i32) {
    %c0_i32 = arith.constant 0 : i32
    %c0_i32_0 = arith.constant 0 : i32
    %c0_i32_1 = arith.constant 0 : i32
    return %c0_i32, %c0_i32_0 : i32, i32
  }
  func.func @transform_5(%arg0: i32) -> (i32, i32, i32) {
    %c0_i32 = arith.constant 0 : i32
    %c0_i32_0 = arith.constant 0 : i32
    %c0_i32_1 = arith.constant 0 : i32
    %c0_i32_2 = arith.constant 0 : i32
    return %c0_i32, %c0_i32_0, %c0_i32_1 : i32, i32, i32
  }
  func.func @transform_6(%arg0: i32) -> (i32, i32) {
    %c0_i32 = arith.constant 0 : i32
    %c0_i32_0 = arith.constant 0 : i32
    %c0_i32_1 = arith.constant 0 : i32
    return %c0_i32, %c0_i32_0 : i32, i32
  }
  func.func @transform_7(%arg0: i32) -> (i32, i32) {
    %c0_i32 = arith.constant 0 : i32
    %c0_i32_0 = arith.constant 0 : i32
    %c0_i32_1 = arith.constant 0 : i32
    return %c0_i32, %c0_i32_0 : i32, i32
  }
}

</mosaic_0001>

<llo_original>
// kernel: apply.1
$region0: #{apply.1}
  #allocation0 [shape = 'u32[]', space=smem, size = 0x4, offset = 0x4, fixed_abs, tag = 'smem constant byte address 0x4 - core index']
  #allocation1 [shape = 'u32[144,128]{1,0:T(1,128)}', space=vmem, size = 0x12000, scoped, tag = 'internal scratch']
  %s0 = inlined_call_operand.vmem [shape: bf16[16,96], index: 0, kind: input, shape index: {}]
  %s1 = inlined_call_operand.vmem [shape: bf16[96,32], index: 1, kind: input, shape index: {}]
  %s2 = inlined_call_operand.vmem [shape: bf16[4,16,16], index: 2, kind: input, shape index: {}]
  %s3 = inlined_call_operand.vmem [shape: bf16[4,2,32,128], index: 3, kind: input, shape index: {}]
  %s4 = inlined_call_operand.hbm [shape: f32[4,128], index: 4, kind: input, shape index: {}]
  %s5 = inlined_call_operand.vmem [shape: f32[4,16,32], index: 5, kind: input, shape index: {}]
  %s6 = inlined_call_operand.hbm [shape: f32[7,32], index: 6, kind: input, shape index: {}]
  %s7 = inlined_call_operand.hbm [shape: f32[16,32], index: 7, kind: output, shape index: {}]
  %s8 = sld [smem:[#allocation0]]
  $region46: #{apply.1} parent=0
    _
  %s10 = ssub.s32 1, %s8
  %s11 = scalar_select 0, %s10, %s8
  $region1: #{apply.1} parent=0
    #allocation2 [shape = 'u8[2048]{0}', space=vmem, size = 0x800, scoped, tag = 'input window, operand 4, single buffered']
    #allocation3 [shape = 's32[1]{0}', space=sflag, size = 0x4, scoped, tag = 'scoped memory for apply.1']
    #allocation4 [shape = 's32[1]{0}', space=sflag, size = 0x4, scoped, tag = 'scoped memory for apply.1']
    #allocation5 [shape = 'u8[4096]{0}', space=vmem, size = 0x1000, scoped, tag = 'input window, operand 6, single buffered']
    #allocation6 [shape = 's32[1]{0}', space=sflag, size = 0x4, scoped, tag = 'scoped memory for apply.1']
    #allocation7 [shape = 'u8[8192]{0}', space=vmem, size = 0x2000, scoped, tag = 'output window, operand 0, single buffered']
    %12 = vsyncpa [#allocation3], 0
    %13 = vsyncpa [#allocation6], 0
    %14 = vsyncpa [#allocation4], 0
    // Predicated region
    $region2: #{apply.1} parent=1 // pred_check
      _
    $region3: #{apply.1} parent=1 // pred_check_branch
      %16 = sbr.rel (0) target = $region5
    $region4: #{apply.1} parent=1 // pred_region
      _
    $region5: #{apply.1} parent=1 // pred_fallthru
      _
    // Predicated region
    $region6: #{apply.1} parent=1 // pred_check
      _
    $region7: #{apply.1} parent=1 // pred_check_branch
      %18 = sbr.rel (0) target = $region9
    $region8: #{apply.1} parent=1 // pred_region
      _
    $region9: #{apply.1} parent=1 // pred_fallthru
      _
    // Predicated region
    $region10: #{apply.1} parent=1 // pred_check
      _
    $region11: #{apply.1} parent=1 // pred_check_branch
      %20 = sbr.rel (0) target = $region13
    $region12: #{apply.1} parent=1 // pred_region
      _
    $region13: #{apply.1} parent=1 // pred_fallthru
      _
    // Predicated region
    $region14: #{apply.1} parent=1 // pred_check
      _
    $region15: #{apply.1} parent=1 // pred_check_branch
      %22 = sbr.rel (0) target = $region17
    $region16: #{apply.1} parent=1 // pred_region
      _
    $region17: #{apply.1} parent=1 // pred_fallthru
      _
    // Predicated region
    $region18: #{apply.1} parent=1 // pred_check
      _
    $region19: #{apply.1} parent=1 // pred_check_branch
      %24 = sbr.rel (0) target = $region21
    $region20: #{apply.1} parent=1 // pred_region
      %s26 = ssub.s32 64, 64
      %27 = vsyncadd [#allocation3], %s26
      %s29 = sshll.u32 [#allocation2], 4
      %s30 = int_to_ptr.vmem [resolvable:$true] %s29
      %32 = dma.hbm_to_vmem [thread:$0]  %s4, 64, %s30, [#allocation3]
    $region21: #{apply.1} parent=1 // pred_fallthru
      _
    // Predicated region
    $region22: #{apply.1} parent=1 // pred_check
      _
    $region23: #{apply.1} parent=1 // pred_check_branch
      %34 = sbr.rel (0) target = $region25
    $region24: #{apply.1} parent=1 // pred_region
      _
    $region25: #{apply.1} parent=1 // pred_fallthru
      _
    // Predicated region
    $region26: #{apply.1} parent=1 // pred_check
      _
    $region27: #{apply.1} parent=1 // pred_check_branch
      %36 = sbr.rel (0) target = $region29
    $region28: #{apply.1} parent=1 // pred_region
      %s38 = ssub.s32 128, 128
      %39 = vsyncadd [#allocation6], %s38
      %s41 = sshll.u32 [#allocation5], 4
      %s42 = int_to_ptr.vmem [resolvable:$true] %s41
      %44 = dma.hbm_to_vmem [thread:$0]  %s6, 128, %s42, [#allocation6]
    $region29: #{apply.1} parent=1 // pred_fallthru
      _
    // Predicated region
    $region30: #{apply.1} parent=1 // pred_check
      _
    $region31: #{apply.1} parent=1 // pred_check_branch
      %46 = sbr.rel (0) target = $region33
    $region32: #{apply.1} parent=1 // pred_region
      %47 = dma.done [#allocation3], 64
    $region33: #{apply.1} parent=1 // pred_fallthru
      _
    // Predicated region
    $region34: #{apply.1} parent=1 // pred_check
      _
    $region35: #{apply.1} parent=1 // pred_check_branch
      %49 = sbr.rel (0) target = $region37
    $region36: #{apply.1} parent=1 // pred_region
      %50 = dma.done [#allocation6], 128
    $region37: #{apply.1} parent=1 // pred_fallthru
      _
    %v52 = vld [vmem:[%s0] sm:$0xf]
    %v53 = vld [vmem:[%s0 + $0x4] sm:$0xf]
    %v54 = vld [vmem:[%s1] sm:$0xf]
    %v55 = vld [vmem:[%s1 + $0x4] sm:$0xf]
    %v56 = vld [vmem:[%s1 + $0x8] sm:$0xf]
    %v57 = vld [vmem:[%s1 + $0xc] sm:$0xf]
    %v58 = vld [vmem:[%s1 + $0x10] sm:$0xf]
    %v59 = vld [vmem:[%s1 + $0x14] sm:$0xf]
    %v60 = vld [vmem:[%s1 + $0x18] sm:$0xf]
    %v61 = vld [vmem:[%s1 + $0x1c] sm:$0xf]
    %v62 = vld [vmem:[%s1 + $0x20] sm:$0xf]
    %v63 = vld [vmem:[%s1 + $0x24] sm:$0xf]
    %v64 = vld [vmem:[%s1 + $0x28] sm:$0xf]
    %v65 = vld [vmem:[%s1 + $0x2c] sm:$0xf]
    %v66 = vld [vmem:[#allocation5 + $0x6] sm:$0x1]
    %v67 = vlaneseq
    %v68 = vshrl.u32 %v67, 7
    %v69 = vsub.s32 0, %v68
    %v70 = vrot.slane %v66, %v69
    %v73 = vunpack.c.l.b16 %v52
    %v74 = vunpack.c.l.b16 %v53
    %v75 = vpack.c.b16 %v74, %v73
    %v88 = vunpack.c.l.b16 %v54
    %v89 = vunpack.c.l.b16 %v55
    %v90 = vunpack.c.l.b16 %v56
    %v91 = vunpack.c.l.b16 %v57
    %v92 = vunpack.c.l.b16 %v58
    %v93 = vunpack.c.l.b16 %v59
    %v94 = vunpack.c.l.b16 %v60
    %v95 = vunpack.c.l.b16 %v61
    %v96 = vunpack.c.l.b16 %v62
    %v97 = vunpack.c.l.b16 %v63
    %v98 = vunpack.c.l.b16 %v64
    %v99 = vunpack.c.l.b16 %v65
    %v100 = vpack.c.b16 %v89, %v88
    %v101 = vpack.c.b16 %v91, %v90
    %v102 = vpack.c.b16 %v93, %v92
    %v103 = vpack.c.b16 %v95, %v94
    %v104 = vpack.c.b16 %v97, %v96
    %v105 = vpack.c.b16 %v99, %v98
    %vm112 = vcmask 785408
    %v114 = vsel %vm112, %v75, 0
    %116 = vmatprep.subr.bf16.mxu0 0
    %117 = vmatpush1.bf16.msra.mxu0 %v100
    %118 = vmatprep.subr.bf16.mxu0 0
    %119 = vmatpush1.bf16.msra.mxu0 %v101
    %120 = vmatprep.subr.bf16.mxu0 0
    %121 = vmatpush1.bf16.msra.mxu0 %v102
    %122 = vmatprep.subr.bf16.mxu0 0
    %123 = vmatpush1.bf16.msra.mxu0 %v103
    %124 = vmatprep.subr.bf16.mxu0 0
    %125 = vmatpush1.bf16.msra.mxu0 %v104
    %126 = vmatprep.subr.bf16.mxu0 0
    %127 = vmatpush1.bf16.msra.mxu0 %v105
    %128 = vmatprep.subr.bf16.mxu0 0
    %129 = vmatpush1.bf16.msra.mxu0 0
    %130 = vmatprep.subr.bf16.mxu0 0
    %131 = vmatpush1.bf16.msra.mxu0 0
    %132 = vmatprep.subr.bf16.mxu0 0
    %133 = vmatpush1.bf16.msra.mxu0 0
    %134 = vmatprep.subr.bf16.mxu0 0
    %135 = vmatpush1.bf16.msra.mxu0 0
    %136 = vmatprep.subr.bf16.mxu0 0
    %137 = vmatpush1.bf16.msra.mxu0 0
    %138 = vmatprep.subr.bf16.mxu0 0
    %139 = vmatpush1.bf16.msra.mxu0 0
    %140 = vmatprep.subr.bf16.mxu0 0
    %141 = vmatpush1.bf16.msra.mxu0 0
    %142 = vmatprep.subr.bf16.mxu0 0
    %143 = vmatpush1.bf16.msra.mxu0 0
    %144 = vmatprep.subr.bf16.mxu0 0
    %145 = vmatpush1.bf16.msra.mxu0 0
    %146 = vmatprep.subr.bf16.mxu0 0
    %147 = vmatpush1.bf16.msra.mxu0 0
    %148 = vmatprep.mubr.bf16.mxu0 0
    %149 = vmatmul.mubr.bf16.gmra.mrb[0].mxu0 %v114
    %v150 = vpop.f32.mrb[0].mxu0
    %v151 = vadd.f32 %v70, %v150
    %v152 = vpop.f32.mrb[0].mxu0
    %v153 = vpop.f32.mrb[0].mxu0
    %v154 = vadd.f32 %v70, %v153
    %v155 = vpop.f32.mrb[0].mxu0
    %156 = vdwg.mxu0
    %v157 = vld [vmem:[%s2] sm:$0xf]
    %v158 = vld [vmem:[%s2 + $0x4] sm:$0xf]
    %v159 = vpack.c.bf16 %v154, %v151
    %v162 = vunpack.c.l.b16 %v157
    %v163 = vunpack.c.l.b16 %v158
    %v164 = vpack.c.b16 %v163, %v162
    %vm165 = vcmask 130048
    %v167 = vsel %vm165, %v164, 0
    %169 = vmatprep.subr.bf16.mxu0 0
    %170 = vmatpush1.bf16.msra.mxu0 %v159
    %171 = vmatprep.subr.bf16.mxu0 0
    %172 = vmatpush1.bf16.msra.mxu0 0
    %173 = vmatprep.subr.bf16.mxu0 0
    %174 = vmatpush1.bf16.msra.mxu0 0
    %175 = vmatprep.subr.bf16.mxu0 0
    %176 = vmatpush1.bf16.msra.mxu0 0
    %177 = vmatprep.subr.bf16.mxu0 0
    %178 = vmatpush1.bf16.msra.mxu0 0
    %179 = vmatprep.subr.bf16.mxu0 0
    %180 = vmatpush1.bf16.msra.mxu0 0
    %181 = vmatprep.subr.bf16.mxu0 0
    %182 = vmatpush1.bf16.msra.mxu0 0
    %183 = vmatprep.subr.bf16.mxu0 0
    %184 = vmatpush1.bf16.msra.mxu0 0
    %185 = vmatprep.subr.bf16.mxu0 0
    %186 = vmatpush1.bf16.msra.mxu0 0
    %187 = vmatprep.subr.bf16.mxu0 0
    %188 = vmatpush1.bf16.msra.mxu0 0
    %189 = vmatprep.subr.bf16.mxu0 0
    %190 = vmatpush1.bf16.msra.mxu0 0
    %191 = vmatprep.subr.bf16.mxu0 0
    %192 = vmatpush1.bf16.msra.mxu0 0
    %193 = vmatprep.subr.bf16.mxu0 0
    %194 = vmatpush1.bf16.msra.mxu0 0
    %195 = vmatprep.subr.bf16.mxu0 0
    %196 = vmatpush1.bf16.msra.mxu0 0
    %197 = vmatprep.subr.bf16.mxu0 0
    %198 = vmatpush1.bf16.msra.mxu0 0
    %199 = vmatprep.subr.bf16.mxu0 0
    %200 = vmatpush1.bf16.msra.mxu0 0
    %201 = vmatprep.mubr.bf16.mxu0 0
    %202 = vmatmul.mubr.bf16.gmra.mrb[0].mxu0 %v167
    %v203 = vpop.f32.mrb[0].mxu0
    %v204 = vadd.f32 0.0, %v203
    %v205 = vpop.f32.mrb[0].mxu0
    %v206 = vpop.f32.mrb[0].mxu0
    %v207 = vadd.f32 0.0, %v206
    %v208 = vpop.f32.mrb[0].mxu0
    %209 = vdwg.mxu0
    %v210 = vld [vmem:[#allocation5] sm:$0x1]
    %v211 = vlaneseq
    %v212 = vshrl.u32 %v211, 7
    %v213 = vsub.s32 0, %v212
    %v214 = vrot.slane %v210, %v213
    %v215 = vmul.f32 %v204, %v214
    %v216 = vmul.f32 %v207, %v214
    %v217 = vadd.f32 %v151, %v215
    %v218 = vadd.f32 %v154, %v216
    %v219 = vld [vmem:[%s5] sm:$0xff]
    %v220 = vld [vmem:[%s5 + $0x8] sm:$0xff]
    %v221 = vadd.f32 %v217, %v219
    %v222 = vadd.f32 %v218, %v220
    %v223 = vpack.c.bf16 %v222, %v221
    %v224 = vld [vmem:[%s3] sm:$0xf]
    %v225 = vld [vmem:[%s3 + $0x4] sm:$0xf]
    %v226 = vld [vmem:[%s3 + $0x8] sm:$0xf]
    %v227 = vld [vmem:[%s3 + $0xc] sm:$0xf]
    %v228 = vld [vmem:[#allocation2] sm:$0x1]
    %v229 = vlaneseq
    %v230 = vshrl.u32 %v229, 7
    %v231 = vsub.s32 0, %v230
    %v232 = vrot.slane %v228, %v231
    %v237 = vunpack.c.l.b16 %v224
    %v238 = vunpack.c.l.b16 %v225
    %v239 = vunpack.c.l.b16 %v226
    %v240 = vunpack.c.l.b16 %v227
    %v241 = vpack.c.b16 %v238, %v237
    %v242 = vpack.c.b16 %v240, %v239
    %vm245 = vcmask 261120
    %v247 = vsel %vm245, %v223, 0
    %249 = vmatprep.subr.bf16.mxu0 0
    %250 = vmatpush1.bf16.msra.mxu0 %v241
    %251 = vmatprep.subr.bf16.mxu0 0
    %252 = vmatpush1.bf16.msra.mxu0 %v242
    %253 = vmatprep.subr.bf16.mxu0 0
    %254 = vmatpush1.bf16.msra.mxu0 0
    %255 = vmatprep.subr.bf16.mxu0 0
    %256 = vmatpush1.bf16.msra.mxu0 0
    %257 = vmatprep.subr.bf16.mxu0 0
    %258 = vmatpush1.bf16.msra.mxu0 0
    %259 = vmatprep.subr.bf16.mxu0 0
    %260 = vmatpush1.bf16.msra.mxu0 0
    %261 = vmatprep.subr.bf16.mxu0 0
    %262 = vmatpush1.bf16.msra.mxu0 0
    %263 = vmatprep.subr.bf16.mxu0 0
    %264 = vmatpush1.bf16.msra.mxu0 0
    %265 = vmatprep.subr.bf16.mxu0 0
    %266 = vmatpush1.bf16.msra.mxu0 0
    %267 = vmatprep.subr.bf16.mxu0 0
    %268 = vmatpush1.bf16.msra.mxu0 0
    %269 = vmatprep.subr.bf16.mxu0 0
    %270 = vmatpush1.bf16.msra.mxu0 0
    %271 = vmatprep.subr.bf16.mxu0 0
    %272 = vmatpush1.bf16.msra.mxu0 0
    %273 = vmatprep.subr.bf16.mxu0 0
    %274 = vmatpush1.bf16.msra.mxu0 0
    %275 = vmatprep.subr.bf16.mxu0 0
    %276 = vmatpush1.bf16.msra.mxu0 0
    %277 = vmatprep.subr.bf16.mxu0 0
    %278 = vmatpush1.bf16.msra.mxu0 0
    %279 = vmatprep.subr.bf16.mxu0 0
    %280 = vmatpush1.bf16.msra.mxu0 0
    %281 = vmatprep.mubr.bf16.mxu0 0
    %282 = vmatmul.mubr.bf16.gmra.mrb[0].mxu0 %v247
    %v283 = vpop.f32.mrb[0].mxu0
    %v284 = vadd.f32 %v232, %v283
    %v285 = vpop.f32.mrb[0].mxu0
    %v286 = vpop.f32.mrb[0].mxu0
    %v287 = vadd.f32 %v232, %v286
    %v288 = vpop.f32.mrb[0].mxu0
    %289 = vdwg.mxu0
    %v290 = vmul.f32 %v284, 0.5
    %v291 = vmul.f32 %v287, 0.5
    %v292 = vmul.f32 %v284, 0.70710677
    %v293 = vmul.f32 %v287, 0.70710677
    %v294 = verf.f32.pop %v292
    %v295 = verf.f32.pop %v293
    %v296 = vadd.f32 %v294, 1.0
    %v297 = vadd.f32 %v295, 1.0
    %v298 = vmul.f32 %v290, %v296
    %v299 = vmul.f32 %v291, %v297
    %v300 = vpack.c.bf16 %v299, %v298
    %s301 = scalar_lea.vmem %s3, 16
    %v302 = vld [vmem:[%s301] sm:$0xf]
    %v303 = vld [vmem:[%s301 + $0x4] sm:$0xf]
    %v304 = vld [vmem:[%s301 + $0x8] sm:$0xf]
    %v305 = vld [vmem:[%s301 + $0xc] sm:$0xf]
    %v310 = vunpack.c.l.b16 %v302
    %v311 = vunpack.c.l.b16 %v303
    %v312 = vunpack.c.l.b16 %v304
    %v313 = vunpack.c.l.b16 %v305
    %v314 = vpack.c.b16 %v311, %v310
    %v315 = vpack.c.b16 %v313, %v312
    %318 = vmatprep.subr.bf16.mxu0 0
    %319 = vmatpush1.bf16.xpose.msra.mxu0 %v314
    %320 = vmatprep.subr.bf16.mxu0 0
    %321 = vmatpush1.bf16.xpose.msra.mxu0 %v315
    %322 = vmatprep.subr.bf16.mxu0 0
    %323 = vmatpush1.bf16.xpose.msra.mxu0 0
    %324 = vmatprep.subr.bf16.mxu0 0
    %325 = vmatpush1.bf16.xpose.msra.mxu0 0
    %326 = vmatprep.subr.bf16.mxu0 0
    %327 = vmatpush1.bf16.xpose.msra.mxu0 0
    %328 = vmatprep.subr.bf16.mxu0 0
    %329 = vmatpush1.bf16.xpose.msra.mxu0 0
    %330 = vmatprep.subr.bf16.mxu0 0
    %331 = vmatpush1.bf16.xpose.msra.mxu0 0
    %332 = vmatprep.subr.bf16.mxu0 0
    %333 = vmatpush1.bf16.xpose.msra.mxu0 0
    %334 = vmatprep.subr.bf16.mxu0 0
    %335 = vmatpush1.bf16.xpose.msra.mxu0 0
    %336 = vmatprep.subr.bf16.mxu0 0
    %337 = vmatpush1.bf16.xpose.msra.mxu0 0
    %338 = vmatprep.subr.bf16.mxu0 0
    %339 = vmatpush1.bf16.xpose.msra.mxu0 0
    %340 = vmatprep.subr.bf16.mxu0 0
    %341 = vmatpush1.bf16.xpose.msra.mxu0 0
    %342 = vmatprep.subr.bf16.mxu0 0
    %343 = vmatpush1.bf16.xpose.msra.mxu0 0
    %344 = vmatprep.subr.bf16.mxu0 0
    %345 = vmatpush1.bf16.xpose.msra.mxu0 0
    %346 = vmatprep.subr.bf16.mxu0 0
    %347 = vmatpush1.bf16.xpose.msra.mxu0 0
    %348 = vmatprep.subr.bf16.mxu0 0
    %349 = vmatpush1.bf16.xpose.msra.mxu0 0
    %350 = vmatprep.mubr.bf16.mxu0 0
    %351 = vmatmul.mubr.bf16.gmra.mrb[0].mxu0 %v300
    %v352 = vpop.f32.mrb[0].mxu0
    %v353 = vadd.f32 0.0, %v352
    %v354 = vpop.f32.mrb[0].mxu0
    %v355 = vpop.f32.mrb[0].mxu0
    %v356 = vadd.f32 0.0, %v355
    %v357 = vpop.f32.mrb[0].mxu0
    %358 = vdwg.mxu0
    %v359 = vadd.f32 %v221, %v353
    %v360 = vadd.f32 %v222, %v356
    %s361 = scalar_lea.vmem %s2, 8
    %v362 = vld [vmem:[%s361] sm:$0xf]
    %v363 = vld [vmem:[%s361 + $0x4] sm:$0xf]
    %v364 = vpack.c.bf16 %v360, %v359
    %v367 = vunpack.c.l.b16 %v362
    %v368 = vunpack.c.l.b16 %v363
    %v369 = vpack.c.b16 %v368, %v367
    %v371 = vsel %vm165, %v369, 0
    %373 = vmatprep.subr.bf16.mxu0 0
    %374 = vmatpush1.bf16.msra.mxu0 %v364
    %375 = vmatprep.subr.bf16.mxu0 0
    %376 = vmatpush1.bf16.msra.mxu0 0
    %377 = vmatprep.subr.bf16.mxu0 0
    %378 = vmatpush1.bf16.msra.mxu0 0
    %379 = vmatprep.subr.bf16.mxu0 0
    %380 = vmatpush1.bf16.msra.mxu0 0
    %381 = vmatprep.subr.bf16.mxu0 0
    %382 = vmatpush1.bf16.msra.mxu0 0
    %383 = vmatprep.subr.bf16.mxu0 0
    %384 = vmatpush1.bf16.msra.mxu0 0
    %385 = vmatprep.subr.bf16.mxu0 0
    %386 = vmatpush1.bf16.msra.mxu0 0
    %387 = vmatprep.subr.bf16.mxu0 0
    %388 = vmatpush1.bf16.msra.mxu0 0
    %389 = vmatprep.subr.bf16.mxu0 0
    %390 = vmatpush1.bf16.msra.mxu0 0
    %391 = vmatprep.subr.bf16.mxu0 0
    %392 = vmatpush1.bf16.msra.mxu0 0
    %393 = vmatprep.subr.bf16.mxu0 0
    %394 = vmatpush1.bf16.msra.mxu0 0
    %395 = vmatprep.subr.bf16.mxu0 0
    %396 = vmatpush1.bf16.msra.mxu0 0
    %397 = vmatprep.subr.bf16.mxu0 0
    %398 = vmatpush1.bf16.msra.mxu0 0
    %399 = vmatprep.subr.bf16.mxu0 0
    %400 = vmatpush1.bf16.msra.mxu0 0
    %401 = vmatprep.subr.bf16.mxu0 0
    %402 = vmatpush1.bf16.msra.mxu0 0
    %403 = vmatprep.subr.bf16.mxu0 0
    %404 = vmatpush1.bf16.msra.mxu0 0
    %405 = vmatprep.mubr.bf16.mxu0 0
    %406 = vmatmul.mubr.bf16.gmra.mrb[0].mxu0 %v371
    %v407 = vpop.f32.mrb[0].mxu0
    %v408 = vadd.f32 0.0, %v407
    %v409 = vpop.f32.mrb[0].mxu0
    %v410 = vpop.f32.mrb[0].mxu0
    %v411 = vadd.f32 0.0, %v410
    %v412 = vpop.f32.mrb[0].mxu0
    %413 = vdwg.mxu0
    %v414 = vld [vmem:[#allocation5 + $0x1] sm:$0x1]
    %v415 = vlaneseq
    %v416 = vshrl.u32 %v415, 7
    %v417 = vsub.s32 0, %v416
    %v418 = vrot.slane %v414, %v417
    %v419 = vmul.f32 %v408, %v418
    %v420 = vmul.f32 %v411, %v418
    %v421 = vadd.f32 %v359, %v419
    %v422 = vadd.f32 %v360, %v420
    %s423 = scalar_lea.vmem %s5, 16
    %v424 = vld [vmem:[%s423] sm:$0xff]
    %v425 = vld [vmem:[%s423 + $0x8] sm:$0xff]
    %v426 = vadd.f32 %v421, %v424
    %v427 = vadd.f32 %v422, %v425
    %v428 = vpack.c.bf16 %v427, %v426
    %s429 = scalar_lea.vmem %s3, 32
    %v430 = vld [vmem:[%s429] sm:$0xf]
    %v431 = vld [vmem:[%s429 + $0x4] sm:$0xf]
    %v432 = vld [vmem:[%s429 + $0x8] sm:$0xf]
    %v433 = vld [vmem:[%s429 + $0xc] sm:$0xf]
    %v434 = vld [vmem:[#allocation2 + $0x1] sm:$0x1]
    %v435 = vlaneseq
    %v436 = vshrl.u32 %v435, 7
    %v437 = vsub.s32 0, %v436
    %v438 = vrot.slane %v434, %v437
    %v443 = vunpack.c.l.b16 %v430
    %v444 = vunpack.c.l.b16 %v431
    %v445 = vunpack.c.l.b16 %v432
    %v446 = vunpack.c.l.b16 %v433
    %v447 = vpack.c.b16 %v444, %v443
    %v448 = vpack.c.b16 %v446, %v445
    %v452 = vsel %vm245, %v428, 0
    %454 = vmatprep.subr.bf16.mxu0 0
    %455 = vmatpush1.bf16.msra.mxu0 %v447
    %456 = vmatprep.subr.bf16.mxu0 0
    %457 = vmatpush1.bf16.msra.mxu0 %v448
    %458 = vmatprep.subr.bf16.mxu0 0
    %459 = vmatpush1.bf16.msra.mxu0 0
    %460 = vmatprep.subr.bf16.mxu0 0
    %461 = vmatpush1.bf16.msra.mxu0 0
    %462 = vmatprep.subr.bf16.mxu0 0
    %463 = vmatpush1.bf16.msra.mxu0 0
    %464 = vmatprep.subr.bf16.mxu0 0
    %465 = vmatpush1.bf16.msra.mxu0 0
    %466 = vmatprep.subr.bf16.mxu0 0
    %467 = vmatpush1.bf16.msra.mxu0 0
    %468 = vmatprep.subr.bf16.mxu0 0
    %469 = vmatpush1.bf16.msra.mxu0 0
    %470 = vmatprep.subr.bf16.mxu0 0
    %471 = vmatpush1.bf16.msra.mxu0 0
    %472 = vmatprep.subr.bf16.mxu0 0
    %473 = vmatpush1.bf16.msra.mxu0 0
    %474 = vmatprep.subr.bf16.mxu0 0
    %475 = vmatpush1.bf16.msra.mxu0 0
    %476 = vmatprep.subr.bf16.mxu0 0
    %477 = vmatpush1.bf16.msra.mxu0 0
    %478 = vmatprep.subr.bf16.mxu0 0
    %479 = vmatpush1.bf16.msra.mxu0 0
    %480 = vmatprep.subr.bf16.mxu0 0
    %481 = vmatpush1.bf16.msra.mxu0 0
    %482 = vmatprep.subr.bf16.mxu0 0
    %483 = vmatpush1.bf16.msra.mxu0 0
    %484 = vmatprep.subr.bf16.mxu0 0
    %485 = vmatpush1.bf16.msra.mxu0 0
    %486 = vmatprep.mubr.bf16.mxu0 0
    %487 = vmatmul.mubr.bf16.gmra.mrb[0].mxu0 %v452
    %v488 = vpop.f32.mrb[0].mxu0
    %v489 = vadd.f32 %v438, %v488
    %v490 = vpop.f32.mrb[0].mxu0
    %v491 = vpop.f32.mrb[0].mxu0
    %v492 = vadd.f32 %v438, %v491
    %v493 = vpop.f32.mrb[0].mxu0
    %494 = vdwg.mxu0
    %v495 = vmul.f32 %v489, 0.5
    %v496 = vmul.f32 %v492, 0.5
    %v497 = vmul.f32 %v489, 0.70710677
    %v498 = vmul.f32 %v492, 0.70710677
    %v499 = verf.f32.pop %v497
    %v500 = verf.f32.pop %v498
    %v501 = vadd.f32 %v499, 1.0
    %v502 = vadd.f32 %v500, 1.0
    %v503 = vmul.f32 %v495, %v501
    %v504 = vmul.f32 %v496, %v502
    %v505 = vpack.c.bf16 %v504, %v503
    %s506 = scalar_lea.vmem %s3, 48
    %v507 = vld [vmem:[%s506] sm:$0xf]
    %v508 = vld [vmem:[%s506 + $0x4] sm:$0xf]
    %v509 = vld [vmem:[%s506 + $0x8] sm:$0xf]
    %v510 = vld [vmem:[%s506 + $0xc] sm:$0xf]
    %v515 = vunpack.c.l.b16 %v507
    %v516 = vunpack.c.l.b16 %v508
    %v517 = vunpack.c.l.b16 %v509
    %v518 = vunpack.c.l.b16 %v510
    %v519 = vpack.c.b16 %v516, %v515
    %v520 = vpack.c.b16 %v518, %v517
    %523 = vmatprep.subr.bf16.mxu0 0
    %524 = vmatpush1.bf16.xpose.msra.mxu0 %v519
    %525 = vmatprep.subr.bf16.mxu0 0
    %526 = vmatpush1.bf16.xpose.msra.mxu0 %v520
    %527 = vmatprep.subr.bf16.mxu0 0
    %528 = vmatpush1.bf16.xpose.msra.mxu0 0
    %529 = vmatprep.subr.bf16.mxu0 0
    %530 = vmatpush1.bf16.xpose.msra.mxu0 0
    %531 = vmatprep.subr.bf16.mxu0 0
    %532 = vmatpush1.bf16.xpose.msra.mxu0 0
    %533 = vmatprep.subr.bf16.mxu0 0
    %534 = vmatpush1.bf16.xpose.msra.mxu0 0
    %535 = vmatprep.subr.bf16.mxu0 0
    %536 = vmatpush1.bf16.xpose.msra.mxu0 0
    %537 = vmatprep.subr.bf16.mxu0 0
    %538 = vmatpush1.bf16.xpose.msra.mxu0 0
    %539 = vmatprep.subr.bf16.mxu0 0
    %540 = vmatpush1.bf16.xpose.msra.mxu0 0
    %541 = vmatprep.subr.bf16.mxu0 0
    %542 = vmatpush1.bf16.xpose.msra.mxu0 0
    %543 = vmatprep.subr.bf16.mxu0 0
    %544 = vmatpush1.bf16.xpose.msra.mxu0 0
    %545 = vmatprep.subr.bf16.mxu0 0
    %546 = vmatpush1.bf16.xpose.msra.mxu0 0
    %547 = vmatprep.subr.bf16.mxu0 0
    %548 = vmatpush1.bf16.xpose.msra.mxu0 0
    %549 = vmatprep.subr.bf16.mxu0 0
    %550 = vmatpush1.bf16.xpose.msra.mxu0 0
    %551 = vmatprep.subr.bf16.mxu0 0
    %552 = vmatpush1.bf16.xpose.msra.mxu0 0
    %553 = vmatprep.subr.bf16.mxu0 0
    %554 = vmatpush1.bf16.xpose.msra.mxu0 0
    %555 = vmatprep.mubr.bf16.mxu0 0
    %556 = vmatmul.mubr.bf16.gmra.mrb[0].mxu0 %v505
    %v557 = vpop.f32.mrb[0].mxu0
    %v558 = vadd.f32 0.0, %v557
    %v559 = vpop.f32.mrb[0].mxu0
    %v560 = vpop.f32.mrb[0].mxu0
    %v561 = vadd.f32 0.0, %v560
    %v562 = vpop.f32.mrb[0].mxu0
    %563 = vdwg.mxu0
    %v564 = vadd.f32 %v426, %v558
    %v565 = vadd.f32 %v427, %v561
    %s566 = scalar_lea.vmem %s2, 16
    %v567 = vld [vmem:[%s566] sm:$0xf]
    %v568 = vld [vmem:[%s566 + $0x4] sm:$0xf]
    %v569 = vpack.c.bf16 %v565, %v564
    %v572 = vunpack.c.l.b16 %v567
    %v573 = vunpack.c.l.b16 %v568
    %v574 = vpack.c.b16 %v573, %v572
    %v576 = vsel %vm165, %v574, 0
    %578 = vmatprep.subr.bf16.mxu0 0
    %579 = vmatpush1.bf16.msra.mxu0 %v569
    %580 = vmatprep.subr.bf16.mxu0 0
    %581 = vmatpush1.bf16.msra.mxu0 0
    %582 = vmatprep.subr.bf16.mxu0 0
    %583 = vmatpush1.bf16.msra.mxu0 0
    %584 = vmatprep.subr.bf16.mxu0 0
    %585 = vmatpush1.bf16.msra.mxu0 0
    %586 = vmatprep.subr.bf16.mxu0 0
    %587 = vmatpush1.bf16.msra.mxu0 0
    %588 = vmatprep.subr.bf16.mxu0 0
    %589 = vmatpush1.bf16.msra.mxu0 0
    %590 = vmatprep.subr.bf16.mxu0 0
    %591 = vmatpush1.bf16.msra.mxu0 0
    %592 = vmatprep.subr.bf16.mxu0 0
    %593 = vmatpush1.bf16.msra.mxu0 0
    %594 = vmatprep.subr.bf16.mxu0 0
    %595 = vmatpush1.bf16.msra.mxu0 0
    %596 = vmatprep.subr.bf16.mxu0 0
    %597 = vmatpush1.bf16.msra.mxu0 0
    %598 = vmatprep.subr.bf16.mxu0 0
    %599 = vmatpush1.bf16.msra.mxu0 0
    %600 = vmatprep.subr.bf16.mxu0 0
    %601 = vmatpush1.bf16.msra.mxu0 0
    %602 = vmatprep.subr.bf16.mxu0 0
    %603 = vmatpush1.bf16.msra.mxu0 0
    %604 = vmatprep.subr.bf16.mxu0 0
    %605 = vmatpush1.bf16.msra.mxu0 0
    %606 = vmatprep.subr.bf16.mxu0 0
    %607 = vmatpush1.bf16.msra.mxu0 0
    %608 = vmatprep.subr.bf16.mxu0 0
    %609 = vmatpush1.bf16.msra.mxu0 0
    %610 = vmatprep.mubr.bf16.mxu0 0
    %611 = vmatmul.mubr.bf16.gmra.mrb[0].mxu0 %v576
    %v612 = vpop.f32.mrb[0].mxu0
    %v613 = vadd.f32 0.0, %v612
    %v614 = vpop.f32.mrb[0].mxu0
    %v615 = vpop.f32.mrb[0].mxu0
    %v616 = vadd.f32 0.0, %v615
    %v617 = vpop.f32.mrb[0].mxu0
    %618 = vdwg.mxu0
    %v619 = vld [vmem:[#allocation5 + $0x2] sm:$0x1]
    %v620 = vlaneseq
    %v621 = vshrl.u32 %v620, 7
    %v622 = vsub.s32 0, %v621
    %v623 = vrot.slane %v619, %v622
    %v624 = vmul.f32 %v613, %v623
    %v625 = vmul.f32 %v616, %v623
    %v626 = vadd.f32 %v564, %v624
    %v627 = vadd.f32 %v565, %v625
    %s628 = scalar_lea.vmem %s5, 32
    %v629 = vld [vmem:[%s628] sm:$0xff]
    %v630 = vld [vmem:[%s628 + $0x8] sm:$0xff]
    %v631 = vadd.f32 %v626, %v629
    %v632 = vadd.f32 %v627, %v630
    %v633 = vpack.c.bf16 %v632, %v631
    %s634 = scalar_lea.vmem %s3, 64
    %v635 = vld [vmem:[%s634] sm:$0xf]
    %v636 = vld [vmem:[%s634 + $0x4] sm:$0xf]
    %v637 = vld [vmem:[%s634 + $0x8] sm:$0xf]
    %v638 = vld [vmem:[%s634 + $0xc] sm:$0xf]
    %v639 = vld [vmem:[#allocation2 + $0x2] sm:$0x1]
    %v640 = vlaneseq
    %v641 = vshrl.u32 %v640, 7
    %v642 = vsub.s32 0, %v641
    %v643 = vrot.slane %v639, %v642
    %v648 = vunpack.c.l.b16 %v635
    %v649 = vunpack.c.l.b16 %v636
    %v650 = vunpack.c.l.b16 %v637
    %v651 = vunpack.c.l.b16 %v638
    %v652 = vpack.c.b16 %v649, %v648
    %v653 = vpack.c.b16 %v651, %v650
    %v657 = vsel %vm245, %v633, 0
    %659 = vmatprep.subr.bf16.mxu0 0
    %660 = vmatpush1.bf16.msra.mxu0 %v652
    %661 = vmatprep.subr.bf16.mxu0 0
    %662 = vmatpush1.bf16.msra.mxu0 %v653
    %663 = vmatprep.subr.bf16.mxu0 0
    %664 = vmatpush1.bf16.msra.mxu0 0
    %665 = vmatprep.subr.bf16.mxu0 0
    %666 = vmatpush1.bf16.msra.mxu0 0
    %667 = vmatprep.subr.bf16.mxu0 0
    %668 = vmatpush1.bf16.msra.mxu0 0
    %669 = vmatprep.subr.bf16.mxu0 0
    %670 = vmatpush1.bf16.msra.mxu0 0
    %671 = vmatprep.subr.bf16.mxu0 0
    %672 = vmatpush1.bf16.msra.mxu0 0
    %673 = vmatprep.subr.bf16.mxu0 0
    %674 = vmatpush1.bf16.msra.mxu0 0
    %675 = vmatprep.subr.bf16.mxu0 0
    %676 = vmatpush1.bf16.msra.mxu0 0
    %677 = vmatprep.subr.bf16.mxu0 0
    %678 = vmatpush1.bf16.msra.mxu0 0
    %679 = vmatprep.subr.bf16.mxu0 0
    %680 = vmatpush1.bf16.msra.mxu0 0
    %681 = vmatprep.subr.bf16.mxu0 0
    %682 = vmatpush1.bf16.msra.mxu0 0
    %683 = vmatprep.subr.bf16.mxu0 0
    %684 = vmatpush1.bf16.msra.mxu0 0
    %685 = vmatprep.subr.bf16.mxu0 0
    %686 = vmatpush1.bf16.msra.mxu0 0
    %687 = vmatprep.subr.bf16.mxu0 0
    %688 = vmatpush1.bf16.msra.mxu0 0
    %689 = vmatprep.subr.bf16.mxu0 0
    %690 = vmatpush1.bf16.msra.mxu0 0
    %691 = vmatprep.mubr.bf16.mxu0 0
    %692 = vmatmul.mubr.bf16.gmra.mrb[0].mxu0 %v657
    %v693 = vpop.f32.mrb[0].mxu0
    %v694 = vadd.f32 %v643, %v693
    %v695 = vpop.f32.mrb[0].mxu0
    %v696 = vpop.f32.mrb[0].mxu0
    %v697 = vadd.f32 %v643, %v696
    %v698 = vpop.f32.mrb[0].mxu0
    %699 = vdwg.mxu0
    %v700 = vmul.f32 %v694, 0.5
    %v701 = vmul.f32 %v697, 0.5
    %v702 = vmul.f32 %v694, 0.70710677
    %v703 = vmul.f32 %v697, 0.70710677
    %v704 = verf.f32.pop %v702
    %v705 = verf.f32.pop %v703
    %v706 = vadd.f32 %v704, 1.0
    %v707 = vadd.f32 %v705, 1.0
    %v708 = vmul.f32 %v700, %v706
    %v709 = vmul.f32 %v701, %v707
    %v710 = vpack.c.bf16 %v709, %v708
    %s711 = scalar_lea.vmem %s3, 80
    %v712 = vld [vmem:[%s711] sm:$0xf]
    %v713 = vld [vmem:[%s711 + $0x4] sm:$0xf]
    %v714 = vld [vmem:[%s711 + $0x8] sm:$0xf]
    %v715 = vld [vmem:[%s711 + $0xc] sm:$0xf]
    %v720 = vunpack.c.l.b16 %v712
    %v721 = vunpack.c.l.b16 %v713
    %v722 = vunpack.c.l.b16 %v714
    %v723 = vunpack.c.l.b16 %v715
    %v724 = vpack.c.b16 %v721, %v720
    %v725 = vpack.c.b16 %v723, %v722
    %728 = vmatprep.subr.bf16.mxu0 0
    %729 = vmatpush1.bf16.xpose.msra.mxu0 %v724
    %730 = vmatprep.subr.bf16.mxu0 0
    %731 = vmatpush1.bf16.xpose.msra.mxu0 %v725
    %732 = vmatprep.subr.bf16.mxu0 0
    %733 = vmatpush1.bf16.xpose.msra.mxu0 0
    %734 = vmatprep.subr.bf16.mxu0 0
    %735 = vmatpush1.bf16.xpose.msra.mxu0 0
    %736 = vmatprep.subr.bf16.mxu0 0
    %737 = vmatpush1.bf16.xpose.msra.mxu0 0
    %738 = vmatprep.subr.bf16.mxu0 0
    %739 = vmatpush1.bf16.xpose.msra.mxu0 0
    %740 = vmatprep.subr.bf16.mxu0 0
    %741 = vmatpush1.bf16.xpose.msra.mxu0 0
    %742 = vmatprep.subr.bf16.mxu0 0
    %743 = vmatpush1.bf16.xpose.msra.mxu0 0
    %744 = vmatprep.subr.bf16.mxu0 0
    %745 = vmatpush1.bf16.xpose.msra.mxu0 0
    %746 = vmatprep.subr.bf16.mxu0 0
    %747 = vmatpush1.bf16.xpose.msra.mxu0 0
    %748 = vmatprep.subr.bf16.mxu0 0
    %749 = vmatpush1.bf16.xpose.msra.mxu0 0
    %750 = vmatprep.subr.bf16.mxu0 0
    %751 = vmatpush1.bf16.xpose.msra.mxu0 0
    %752 = vmatprep.subr.bf16.mxu0 0
    %753 = vmatpush1.bf16.xpose.msra.mxu0 0
    %754 = vmatprep.subr.bf16.mxu0 0
    %755 = vmatpush1.bf16.xpose.msra.mxu0 0
    %756 = vmatprep.subr.bf16.mxu0 0
    %757 = vmatpush1.bf16.xpose.msra.mxu0 0
    %758 = vmatprep.subr.bf16.mxu0 0
    %759 = vmatpush1.bf16.xpose.msra.mxu0 0
    %760 = vmatprep.mubr.bf16.mxu0 0
    %761 = vmatmul.mubr.bf16.gmra.mrb[0].mxu0 %v710
    %v762 = vpop.f32.mrb[0].mxu0
    %v763 = vadd.f32 0.0, %v762
    %v764 = vpop.f32.mrb[0].mxu0
    %v765 = vpop.f32.mrb[0].mxu0
    %v766 = vadd.f32 0.0, %v765
    %v767 = vpop.f32.mrb[0].mxu0
    %768 = vdwg.mxu0
    %v769 = vadd.f32 %v631, %v763
    %v770 = vadd.f32 %v632, %v766
    %s771 = scalar_lea.vmem %s2, 24
    %v772 = vld [vmem:[%s771] sm:$0xf]
    %v773 = vld [vmem:[%s771 + $0x4] sm:$0xf]
    %v774 = vpack.c.bf16 %v770, %v769
    %v777 = vunpack.c.l.b16 %v772
    %v778 = vunpack.c.l.b16 %v773
    %v779 = vpack.c.b16 %v778, %v777
    %v781 = vsel %vm165, %v779, 0
    %783 = vmatprep.subr.bf16.mxu0 0
    %784 = vmatpush1.bf16.msra.mxu0 %v774
    %785 = vmatprep.subr.bf16.mxu0 0
    %786 = vmatpush1.bf16.msra.mxu0 0
    %787 = vmatprep.subr.bf16.mxu0 0
    %788 = vmatpush1.bf16.msra.mxu0 0
    %789 = vmatprep.subr.bf16.mxu0 0
    %790 = vmatpush1.bf16.msra.mxu0 0
    %791 = vmatprep.subr.bf16.mxu0 0
    %792 = vmatpush1.bf16.msra.mxu0 0
    %793 = vmatprep.subr.bf16.mxu0 0
    %794 = vmatpush1.bf16.msra.mxu0 0
    %795 = vmatprep.subr.bf16.mxu0 0
    %796 = vmatpush1.bf16.msra.mxu0 0
    %797 = vmatprep.subr.bf16.mxu0 0
    %798 = vmatpush1.bf16.msra.mxu0 0
    %799 = vmatprep.subr.bf16.mxu0 0
    %800 = vmatpush1.bf16.msra.mxu0 0
    %801 = vmatprep.subr.bf16.mxu0 0
    %802 = vmatpush1.bf16.msra.mxu0 0
    %803 = vmatprep.subr.bf16.mxu0 0
    %804 = vmatpush1.bf16.msra.mxu0 0
    %805 = vmatprep.subr.bf16.mxu0 0
    %806 = vmatpush1.bf16.msra.mxu0 0
    %807 = vmatprep.subr.bf16.mxu0 0
    %808 = vmatpush1.bf16.msra.mxu0 0
    %809 = vmatprep.subr.bf16.mxu0 0
    %810 = vmatpush1.bf16.msra.mxu0 0
    %811 = vmatprep.subr.bf16.mxu0 0
    %812 = vmatpush1.bf16.msra.mxu0 0
    %813 = vmatprep.subr.bf16.mxu0 0
    %814 = vmatpush1.bf16.msra.mxu0 0
    %815 = vmatprep.mubr.bf16.mxu0 0
    %816 = vmatmul.mubr.bf16.gmra.mrb[0].mxu0 %v781
    %v817 = vpop.f32.mrb[0].mxu0
    %v818 = vadd.f32 0.0, %v817
    %v819 = vpop.f32.mrb[0].mxu0
    %v820 = vpop.f32.mrb[0].mxu0
    %v821 = vadd.f32 0.0, %v820
    %v822 = vpop.f32.mrb[0].mxu0
    %823 = vdwg.mxu0
    %v824 = vld [vmem:[#allocation5 + $0x3] sm:$0x1]
    %v825 = vlaneseq
    %v826 = vshrl.u32 %v825, 7
    %v827 = vsub.s32 0, %v826
    %v828 = vrot.slane %v824, %v827
    %v829 = vmul.f32 %v818, %v828
    %v830 = vmul.f32 %v821, %v828
    %v831 = vadd.f32 %v769, %v829
    %v832 = vadd.f32 %v770, %v830
    %s833 = scalar_lea.vmem %s5, 48
    %v834 = vld [vmem:[%s833] sm:$0xff]
    %v835 = vld [vmem:[%s833 + $0x8] sm:$0xff]
    %v836 = vadd.f32 %v831, %v834
    %v837 = vadd.f32 %v832, %v835
    %v838 = vpack.c.bf16 %v837, %v836
    %s839 = scalar_lea.vmem %s3, 96
    %v840 = vld [vmem:[%s839] sm:$0xf]
    %v841 = vld [vmem:[%s839 + $0x4] sm:$0xf]
    %v842 = vld [vmem:[%s839 + $0x8] sm:$0xf]
    %v843 = vld [vmem:[%s839 + $0xc] sm:$0xf]
    %v844 = vld [vmem:[#allocation2 + $0x3] sm:$0x1]
    %v845 = vlaneseq
    %v846 = vshrl.u32 %v845, 7
    %v847 = vsub.s32 0, %v846
    %v848 = vrot.slane %v844, %v847
    %v853 = vunpack.c.l.b16 %v840
    %v854 = vunpack.c.l.b16 %v841
    %v855 = vunpack.c.l.b16 %v842
    %v856 = vunpack.c.l.b16 %v843
    %v857 = vpack.c.b16 %v854, %v853
    %v858 = vpack.c.b16 %v856, %v855
    %v862 = vsel %vm245, %v838, 0
    %864 = vmatprep.subr.bf16.mxu0 0
    %865 = vmatpush1.bf16.msra.mxu0 %v857
    %866 = vmatprep.subr.bf16.mxu0 0
    %867 = vmatpush1.bf16.msra.mxu0 %v858
    %868 = vmatprep.subr.bf16.mxu0 0
    %869 = vmatpush1.bf16.msra.mxu0 0
    %870 = vmatprep.subr.bf16.mxu0 0
    %871 = vmatpush1.bf16.msra.mxu0 0
    %872 = vmatprep.subr.bf16.mxu0 0
    %873 = vmatpush1.bf16.msra.mxu0 0
    %874 = vmatprep.subr.bf16.mxu0 0
    %875 = vmatpush1.bf16.msra.mxu0 0
    %876 = vmatprep.subr.bf16.mxu0 0
    %877 = vmatpush1.bf16.msra.mxu0 0
    %878 = vmatprep.subr.bf16.mxu0 0
    %879 = vmatpush1.bf16.msra.mxu0 0
    %880 = vmatprep.subr.bf16.mxu0 0
    %881 = vmatpush1.bf16.msra.mxu0 0
    %882 = vmatprep.subr.bf16.mxu0 0
    %883 = vmatpush1.bf16.msra.mxu0 0
    %884 = vmatprep.subr.bf16.mxu0 0
    %885 = vmatpush1.bf16.msra.mxu0 0
    %886 = vmatprep.subr.bf16.mxu0 0
    %887 = vmatpush1.bf16.msra.mxu0 0
    %888 = vmatprep.subr.bf16.mxu0 0
    %889 = vmatpush1.bf16.msra.mxu0 0
    %890 = vmatprep.subr.bf16.mxu0 0
    %891 = vmatpush1.bf16.msra.mxu0 0
    %892 = vmatprep.subr.bf16.mxu0 0
    %893 = vmatpush1.bf16.msra.mxu0 0
    %894 = vmatprep.subr.bf16.mxu0 0
    %895 = vmatpush1.bf16.msra.mxu0 0
    %896 = vmatprep.mubr.bf16.mxu0 0
    %897 = vmatmul.mubr.bf16.gmra.mrb[0].mxu0 %v862
    %v898 = vpop.f32.mrb[0].mxu0
    %v899 = vadd.f32 %v848, %v898
    %v900 = vpop.f32.mrb[0].mxu0
    %v901 = vpop.f32.mrb[0].mxu0
    %v902 = vadd.f32 %v848, %v901
    %v903 = vpop.f32.mrb[0].mxu0
    %904 = vdwg.mxu0
    %v905 = vmul.f32 %v899, 0.5
    %v906 = vmul.f32 %v902, 0.5
    %v907 = vmul.f32 %v899, 0.70710677
    %v908 = vmul.f32 %v902, 0.70710677
    %v909 = verf.f32.pop %v907
    %v910 = verf.f32.pop %v908
    %v911 = vadd.f32 %v909, 1.0
    %v912 = vadd.f32 %v910, 1.0
    %v913 = vmul.f32 %v905, %v911
    %v914 = vmul.f32 %v906, %v912
    %v915 = vpack.c.bf16 %v914, %v913
    %s916 = scalar_lea.vmem %s3, 112
    %v917 = vld [vmem:[%s916] sm:$0xf]
    %v918 = vld [vmem:[%s916 + $0x4] sm:$0xf]
    %v919 = vld [vmem:[%s916 + $0x8] sm:$0xf]
    %v920 = vld [vmem:[%s916 + $0xc] sm:$0xf]
    %v925 = vunpack.c.l.b16 %v917
    %v926 = vunpack.c.l.b16 %v918
    %v927 = vunpack.c.l.b16 %v919
    %v928 = vunpack.c.l.b16 %v920
    %v929 = vpack.c.b16 %v926, %v925
    %v930 = vpack.c.b16 %v928, %v927
    %933 = vmatprep.subr.bf16.mxu0 0
    %934 = vmatpush1.bf16.xpose.msra.mxu0 %v929
    %935 = vmatprep.subr.bf16.mxu0 0
    %936 = vmatpush1.bf16.xpose.msra.mxu0 %v930
    %937 = vmatprep.subr.bf16.mxu0 0
    %938 = vmatpush1.bf16.xpose.msra.mxu0 0
    %939 = vmatprep.subr.bf16.mxu0 0
    %940 = vmatpush1.bf16.xpose.msra.mxu0 0
    %941 = vmatprep.subr.bf16.mxu0 0
    %942 = vmatpush1.bf16.xpose.msra.mxu0 0
    %943 = vmatprep.subr.bf16.mxu0 0
    %944 = vmatpush1.bf16.xpose.msra.mxu0 0
    %945 = vmatprep.subr.bf16.mxu0 0
    %946 = vmatpush1.bf16.xpose.msra.mxu0 0
    %947 = vmatprep.subr.bf16.mxu0 0
    %948 = vmatpush1.bf16.xpose.msra.mxu0 0
    %949 = vmatprep.subr.bf16.mxu0 0
    %950 = vmatpush1.bf16.xpose.msra.mxu0 0
    %951 = vmatprep.subr.bf16.mxu0 0
    %952 = vmatpush1.bf16.xpose.msra.mxu0 0
    %953 = vmatprep.subr.bf16.mxu0 0
    %954 = vmatpush1.bf16.xpose.msra.mxu0 0
    %955 = vmatprep.subr.bf16.mxu0 0
    %956 = vmatpush1.bf16.xpose.msra.mxu0 0
    %957 = vmatprep.subr.bf16.mxu0 0
    %958 = vmatpush1.bf16.xpose.msra.mxu0 0
    %959 = vmatprep.subr.bf16.mxu0 0
    %960 = vmatpush1.bf16.xpose.msra.mxu0 0
    %961 = vmatprep.subr.bf16.mxu0 0
    %962 = vmatpush1.bf16.xpose.msra.mxu0 0
    %963 = vmatprep.subr.bf16.mxu0 0
    %964 = vmatpush1.bf16.xpose.msra.mxu0 0
    %965 = vmatprep.mubr.bf16.mxu0 0
    %966 = vmatmul.mubr.bf16.gmra.mrb[0].mxu0 %v915
    %v967 = vpop.f32.mrb[0].mxu0
    %v968 = vadd.f32 0.0, %v967
    %v969 = vpop.f32.mrb[0].mxu0
    %v970 = vpop.f32.mrb[0].mxu0
    %v971 = vadd.f32 0.0, %v970
    %v972 = vpop.f32.mrb[0].mxu0
    %973 = vdwg.mxu0
    %v974 = vadd.f32 %v836, %v968
    %v975 = vadd.f32 %v837, %v971
    %v976 = vld [vmem:[#allocation5 + $0x4] sm:$0x1]
    %v977 = vlaneseq
    %v978 = vshrl.u32 %v977, 7
    %v979 = vsub.s32 0, %v978
    %v980 = vrot.slane %v976, %v979
    %v981 = vmul.f32 %v974, %v980
    %v982 = vmul.f32 %v975, %v980
    %v983 = vld [vmem:[#allocation5 + $0x5] sm:$0x1]
    %v984 = vlaneseq
    %v985 = vshrl.u32 %v984, 7
    %v986 = vsub.s32 0, %v985
    %v987 = vrot.slane %v983, %v986
    %v988 = vadd.f32 %v981, %v987
    %v989 = vadd.f32 %v982, %v987
    %990 = vst.msk [vmem:[#allocation7] sm:$0xff] %vm245, %v988
    %991 = vst.msk [vmem:[#allocation7 + $0x8] sm:$0xff] %vm245, %v989
    // Predicated region
    $region38: #{apply.1} parent=1 // pred_check
      _
    $region39: #{apply.1} parent=1 // pred_check_branch
      %993 = sbr.rel (0) target = $region41
    $region40: #{apply.1} parent=1 // pred_region
      %s995 = ssub.s32 256, 256
      %996 = vsyncadd [#allocation4], %s995
      %s997 = sshll.u32 [#allocation7], 4
      %s998 = int_to_ptr.vmem [resolvable:$true] %s997
      %1003 = dma.vmem_to_hbm [thread:$0]  %s998, 256, %s7, [#allocation4], 128, 128, 8
    $region41: #{apply.1} parent=1 // pred_fallthru
      _
    // Predicated region
    $region42: #{apply.1} parent=1 // pred_check
      _
    $region43: #{apply.1} parent=1 // pred_check_branch
      %1005 = sbr.rel (0) target = $region45
    $region44: #{apply.1} parent=1 // pred_region
      %1006 = dma.done [#allocation4], 256
    $region45: #{apply.1} parent=1 // pred_fallthru
      _
    %1007 = vsyncpa [#allocation3], 1
    %1008 = vsyncpa [#allocation6], 1
    %1009 = vsyncpa [#allocation4], 1

</llo_original>
